<compile_context>
chip_gen: v5e
topology: v5e:2x2
jax: 0.10.0
libtpu: 0.0.40
codegen_flags: <defaults>
</compile_context>

<pallas_src>
import jax
import jax.numpy as jnp
from jax.experimental import pallas as pl
from jax.experimental.pallas import tpu as pltpu

# Module-consistent shapes.
B, C, H, W = 2, 4, 16, 16          # input images (NCHW, PyTorch convention)
KH = KW = 3                        # conv kernel ('same' padding)
FEAT = 128                         # encoder feature dim (classifier input)
NCLS = 2                           # nn.Linear(128, 2)
HW = H * W                         # 256 pixels per image
NPIX = B * HW                      # 512 valid output pixel rows
K = KH * KW * C                    # 36: conv contraction depth (lane-packed)
K_PAD = 128                        # contraction depth padded to full lanes
CHUNK = 128                        # pixel rows per MXU pass
NCHUNK = NPIX // CHUNK             # 4


def encoder_classifier_kernel(p_ref, wc_ref, bc_ref, pool_ref, wl_ref, bl_ref,
                              out_ref):
    # p_ref   : (NPIX, K_PAD)  bf16 lane-packed im2col patches (lanes >= K are 0)
    # wc_ref  : (K_PAD, FEAT)  bf16 fused conv weight (rows >= K are 0)
    # bc_ref  : (1, FEAT)      f32  conv bias
    # pool_ref: (B, NPIX)      f32  GAP matrix (1/HW on each image's own pixels)
    # wl_ref  : (FEAT, NCLS)   f32  classifier weight
    # bl_ref  : (1, NCLS)      f32  classifier bias
    # out_ref : (B, NCLS)      f32  logits
    wc = wc_ref[...]                     # hoisted out of the chunk loop
    bc = bc_ref[...]

    feat = jnp.zeros((B, FEAT), jnp.float32)
    # 3x3 conv == ONE lane-packed K=36(->128) matmul, processed in aligned
    # 128-row chunks so the live activation stays ~16 vregs and the pooled
    # (B, FEAT) partial is the only carried state (no scratch, no RMW).
    for cnk in range(NCHUNK):
        lo, hi = cnk * CHUNK, (cnk + 1) * CHUNK
        patches = p_ref[lo:hi, :]                                   # (128, 128) bf16
        h = jnp.dot(patches, wc, preferred_element_type=jnp.float32)
        h = jnp.maximum(h + bc, 0.0)                                # bias + ReLU, f32 VPU
        # GAP as a pooling matmul on the MXU (valid-row select + 1/HW folded).
        feat = feat + jnp.dot(pool_ref[:, lo:hi], h,
                              preferred_element_type=jnp.float32)   # (B, FEAT)

    # Classifier Linear(128, 2); the tiny (B, 2) masked store is free.
    out_ref[...] = (jnp.dot(feat, wl_ref[...],
                            preferred_element_type=jnp.float32) + bl_ref[...])


def _prepare_kernel_params(wc, bc, wl, bl):
    """One-time transform of natural-shape params into kernel layouts."""
    # wc: (KH, KW, C, FEAT), bc: (FEAT,), wl: (FEAT, NCLS), bl: (NCLS,)
    wc_k = (jnp.zeros((K_PAD, FEAT), jnp.float32)
            .at[:K, :].set(wc.reshape(K, FEAT))
            .astype(jnp.bfloat16))
    bc_k = bc.reshape(1, FEAT).astype(jnp.float32)
    # pool[b, p] = 1/HW iff pixel row p belongs to image b (exact: 1/256 = 2^-8).
    pool = jnp.repeat(jnp.eye(B, dtype=jnp.float32), HW, axis=1) / HW  # (B, NPIX)
    wl_k = wl.astype(jnp.float32)                                       # (FEAT, NCLS)
    bl_k = bl.reshape(1, NCLS).astype(jnp.float32)
    return wc_k, bc_k, pool, wl_k, bl_k


@jax.jit
def image_cam_wrapper_forward(x_nchw, wc_k, bc_k, pool, wl_k, bl_k):
    # Lane-only im2col in the (jitted) wrapper: NCHW->NHWC, 'same' zero pad,
    # 9 tap slices concatenated along lanes, zero-padded to 128 lanes, bf16.
    # All of this fuses into one tiny XLA fusion ahead of the pallas_call.
    x = jnp.transpose(x_nchw, (0, 2, 3, 1)).astype(jnp.float32)     # (B, H, W, C)
    xp = jnp.pad(x, ((0, 0), (1, 1), (1, 1), (0, 0)))               # (B, H+2, W+2, C)
    cols = [xp[:, dy:dy + H, dx:dx + W, :]
            for dy in range(KH) for dx in range(KW)]
    patches = jnp.concatenate(cols, axis=-1).reshape(NPIX, K)       # (512, 36)
    patches = jnp.pad(patches, ((0, 0), (0, K_PAD - K))).astype(jnp.bfloat16)

    cost = pl.CostEstimate(
        flops=(2 * NPIX * K_PAD * FEAT          # conv matmul
               + 2 * B * NPIX * FEAT            # GAP pooling matmul
               + 2 * B * FEAT * NCLS),          # classifier
        transcendentals=0,
        bytes_accessed=(2 * (patches.size + wc_k.size)
                        + 4 * (bc_k.size + pool.size + wl_k.size + bl_k.size
                               + B * NCLS)),
    )
    return pl.pallas_call(
        encoder_classifier_kernel,
        out_shape=jax.ShapeDtypeStruct((B, NCLS), jnp.float32),
        in_specs=[pl.BlockSpec(memory_space=pltpu.MemorySpace.VMEM)] * 6,
        out_specs=pl.BlockSpec(memory_space=pltpu.MemorySpace.VMEM),
        cost_estimate=cost,
    )(patches, wc_k, bc_k, pool, wl_k, bl_k)


def _reference_forward(x_nchw, wc, bc, wl, bl):
    # Pure-JAX reference at highest matmul precision, all f32.
    x = jnp.transpose(x_nchw, (0, 2, 3, 1)).astype(jnp.float32)
    xp = jnp.pad(x, ((0, 0), (1, 1), (1, 1), (0, 0)))
    cols = [xp[:, dy:dy + H, dx:dx + W, :]
            for dy in range(KH) for dx in range(KW)]
    patches = jnp.concatenate(cols, axis=-1).reshape(NPIX, K)
    h = jnp.maximum(
        jnp.dot(patches, wc.reshape(K, FEAT), precision="highest") + bc, 0.0)
    feat = h.reshape(B, HW, FEAT).mean(axis=1)
    return jnp.dot(feat, wl, precision="highest") + bl


if __name__ == "__main__":
    key = jax.random.PRNGKey(0)
    kx, k_wc, k_bc, k_wl, k_bl = jax.random.split(key, 5)

    # Deterministic synthetic parameters (fan-in scaled, like PyTorch defaults).
    x = jax.random.normal(kx, (B, C, H, W), jnp.float32)
    fan_in = KH * KW * C
    wc = jax.random.normal(k_wc, (KH, KW, C, FEAT), jnp.float32) / (fan_in ** 0.5)
    bc = jax.random.normal(k_bc, (FEAT,), jnp.float32) * 0.01
    wl = jax.random.normal(k_wl, (FEAT, NCLS), jnp.float32) / (FEAT ** 0.5)
    bl = jax.random.normal(k_bl, (NCLS,), jnp.float32) * 0.01

    kparams = _prepare_kernel_params(wc, bc, wl, bl)
    out = image_cam_wrapper_forward(x, *kparams)
    out = jax.block_until_ready(out)

    ref = _reference_forward(x, wc, bc, wl, bl)
    assert out.shape == (B, NCLS)
    # Tolerance covers bf16 conv-operand rounding (f32 accumulation) and MXU
    # accumulation-order differences vs the highest-precision XLA reference.
    assert jnp.allclose(out, ref, atol=2e-2, rtol=2e-2), (
        f"max abs err {jnp.max(jnp.abs(out - ref))}")
    print("KERNEL_OK")
</pallas_src>

<mosaic_0001>
module attributes {stable_mosaic.version = 11 : i64} {
  func.func @encoder_classifier_kernel(%arg0: memref<512x128xbf16, #tpu.memory_space<vmem>>, %arg1: memref<128x128xbf16, #tpu.memory_space<vmem>>, %arg2: memref<1x128xf32, #tpu.memory_space<vmem>>, %arg3: memref<2x512xf32, #tpu.memory_space<vmem>>, %arg4: memref<128x2xf32, #tpu.memory_space<vmem>>, %arg5: memref<1x2xf32, #tpu.memory_space<vmem>>, %arg6: memref<2x2xf32, #tpu.memory_space<vmem>>) attributes {dimension_semantics = [], scalar_prefetch = 0 : i64, scratch_operands = 0 : i64, tpu.core_type = #tpu.core_type<tc>} {
    %c0 = arith.constant 0 : index
    %c0_0 = arith.constant 0 : index
    %0 = vector.load %arg1[%c0, %c0_0] : memref<128x128xbf16, #tpu.memory_space<vmem>>, vector<128x128xbf16>
    %c0_1 = arith.constant 0 : index
    %c0_2 = arith.constant 0 : index
    %1 = vector.load %arg2[%c0_1, %c0_2] : memref<1x128xf32, #tpu.memory_space<vmem>>, vector<1x128xf32>
    %cst = arith.constant 0.000000e+00 : f32
    %2 = vector.broadcast %cst : f32 to vector<2x128xf32>
    %c0_3 = arith.constant 0 : index
    %c0_4 = arith.constant 0 : index
    %3 = vector.load %arg0[%c0_3, %c0_4] : memref<512x128xbf16, #tpu.memory_space<vmem>>, vector<128x128xbf16>
    %cst_5 = arith.constant dense<0.000000e+00> : vector<128x128xf32>
    %4 = tpu.matmul %3, %0, %cst_5 {dimension_numbers = #tpu.dot_dimension_numbers<[1], [0], [0], [1], [0, 0, 1, 1], [], []>} : vector<128x128xbf16>, vector<128x128xbf16>, vector<128x128xf32> -> vector<128x128xf32>
    %5 = vector.broadcast %1 : vector<1x128xf32> to vector<128x128xf32>
    %6 = arith.addf %4, %5 : vector<128x128xf32>
    %cst_6 = arith.constant 0.000000e+00 : f32
    %7 = vector.broadcast %cst_6 : f32 to vector<128x128xf32>
    %8 = arith.maximumf %6, %7 : vector<128x128xf32>
    %c0_7 = arith.constant 0 : index
    %c0_8 = arith.constant 0 : index
    %9 = vector.load %arg3[%c0_7, %c0_8] : memref<2x512xf32, #tpu.memory_space<vmem>>, vector<2x128xf32>
    %cst_9 = arith.constant dense<0.000000e+00> : vector<2x128xf32>
    %10 = tpu.matmul %9, %8, %cst_9 {dimension_numbers = #tpu.dot_dimension_numbers<[1], [0], [0], [1], [0, 0, 1, 1], [], []>} : vector<2x128xf32>, vector<128x128xf32>, vector<2x128xf32> -> vector<2x128xf32>
    %11 = arith.addf %2, %10 : vector<2x128xf32>
    %c128 = arith.constant 128 : index
    %c0_10 = arith.constant 0 : index
    %12 = vector.load %arg0[%c128, %c0_10] : memref<512x128xbf16, #tpu.memory_space<vmem>>, vector<128x128xbf16>
    %cst_11 = arith.constant dense<0.000000e+00> : vector<128x128xf32>
    %13 = tpu.matmul %12, %0, %cst_11 {dimension_numbers = #tpu.dot_dimension_numbers<[1], [0], [0], [1], [0, 0, 1, 1], [], []>} : vector<128x128xbf16>, vector<128x128xbf16>, vector<128x128xf32> -> vector<128x128xf32>
    %14 = vector.broadcast %1 : vector<1x128xf32> to vector<128x128xf32>
    %15 = arith.addf %13, %14 : vector<128x128xf32>
    %cst_12 = arith.constant 0.000000e+00 : f32
    %16 = vector.broadcast %cst_12 : f32 to vector<128x128xf32>
    %17 = arith.maximumf %15, %16 : vector<128x128xf32>
    %c0_13 = arith.constant 0 : index
    %c128_14 = arith.constant 128 : index
    %18 = vector.load %arg3[%c0_13, %c128_14] : memref<2x512xf32, #tpu.memory_space<vmem>>, vector<2x128xf32>
    %cst_15 = arith.constant dense<0.000000e+00> : vector<2x128xf32>
    %19 = tpu.matmul %18, %17, %cst_15 {dimension_numbers = #tpu.dot_dimension_numbers<[1], [0], [0], [1], [0, 0, 1, 1], [], []>} : vector<2x128xf32>, vector<128x128xf32>, vector<2x128xf32> -> vector<2x128xf32>
    %20 = arith.addf %11, %19 : vector<2x128xf32>
    %c256 = arith.constant 256 : index
    %c0_16 = arith.constant 0 : index
    %21 = vector.load %arg0[%c256, %c0_16] : memref<512x128xbf16, #tpu.memory_space<vmem>>, vector<128x128xbf16>
    %cst_17 = arith.constant dense<0.000000e+00> : vector<128x128xf32>
    %22 = tpu.matmul %21, %0, %cst_17 {dimension_numbers = #tpu.dot_dimension_numbers<[1], [0], [0], [1], [0, 0, 1, 1], [], []>} : vector<128x128xbf16>, vector<128x128xbf16>, vector<128x128xf32> -> vector<128x128xf32>
    %23 = vector.broadcast %1 : vector<1x128xf32> to vector<128x128xf32>
    %24 = arith.addf %22, %23 : vector<128x128xf32>
    %cst_18 = arith.constant 0.000000e+00 : f32
    %25 = vector.broadcast %cst_18 : f32 to vector<128x128xf32>
    %26 = arith.maximumf %24, %25 : vector<128x128xf32>
    %c0_19 = arith.constant 0 : index
    %c256_20 = arith.constant 256 : index
    %27 = vector.load %arg3[%c0_19, %c256_20] : memref<2x512xf32, #tpu.memory_space<vmem>>, vector<2x128xf32>
    %cst_21 = arith.constant dense<0.000000e+00> : vector<2x128xf32>
    %28 = tpu.matmul %27, %26, %cst_21 {dimension_numbers = #tpu.dot_dimension_numbers<[1], [0], [0], [1], [0, 0, 1, 1], [], []>} : vector<2x128xf32>, vector<128x128xf32>, vector<2x128xf32> -> vector<2x128xf32>
    %29 = arith.addf %20, %28 : vector<2x128xf32>
    %c384 = arith.constant 384 : index
    %c0_22 = arith.constant 0 : index
    %30 = vector.load %arg0[%c384, %c0_22] : memref<512x128xbf16, #tpu.memory_space<vmem>>, vector<128x128xbf16>
    %cst_23 = arith.constant dense<0.000000e+00> : vector<128x128xf32>
    %31 = tpu.matmul %30, %0, %cst_23 {dimension_numbers = #tpu.dot_dimension_numbers<[1], [0], [0], [1], [0, 0, 1, 1], [], []>} : vector<128x128xbf16>, vector<128x128xbf16>, vector<128x128xf32> -> vector<128x128xf32>
    %32 = vector.broadcast %1 : vector<1x128xf32> to vector<128x128xf32>
    %33 = arith.addf %31, %32 : vector<128x128xf32>
    %cst_24 = arith.constant 0.000000e+00 : f32
    %34 = vector.broadcast %cst_24 : f32 to vector<128x128xf32>
    %35 = arith.maximumf %33, %34 : vector<128x128xf32>
    %c0_25 = arith.constant 0 : index
    %c384_26 = arith.constant 384 : index
    %36 = vector.load %arg3[%c0_25, %c384_26] : memref<2x512xf32, #tpu.memory_space<vmem>>, vector<2x128xf32>
    %cst_27 = arith.constant dense<0.000000e+00> : vector<2x128xf32>
    %37 = tpu.matmul %36, %35, %cst_27 {dimension_numbers = #tpu.dot_dimension_numbers<[1], [0], [0], [1], [0, 0, 1, 1], [], []>} : vector<2x128xf32>, vector<128x128xf32>, vector<2x128xf32> -> vector<2x128xf32>
    %38 = arith.addf %29, %37 : vector<2x128xf32>
    %c0_28 = arith.constant 0 : index
    %c0_29 = arith.constant 0 : index
    %39 = vector.load %arg4[%c0_28, %c0_29] : memref<128x2xf32, #tpu.memory_space<vmem>>, vector<128x2xf32>
    %cst_30 = arith.constant dense<0.000000e+00> : vector<2x2xf32>
    %40 = tpu.matmul %38, %39, %cst_30 {dimension_numbers = #tpu.dot_dimension_numbers<[1], [0], [0], [1], [0, 0, 1, 1], [], []>} : vector<2x128xf32>, vector<128x2xf32>, vector<2x2xf32> -> vector<2x2xf32>
    %c0_31 = arith.constant 0 : index
    %c0_32 = arith.constant 0 : index
    %41 = vector.load %arg5[%c0_31, %c0_32] : memref<1x2xf32, #tpu.memory_space<vmem>>, vector<1x2xf32>
    %42 = vector.broadcast %41 : vector<1x2xf32> to vector<2x2xf32>
    %43 = arith.addf %40, %42 : vector<2x2xf32>
    %c0_33 = arith.constant 0 : index
    %c0_34 = arith.constant 0 : index
    %44 = vector.load %arg6[%c0_33, %c0_34] : memref<2x2xf32, #tpu.memory_space<vmem>>, vector<2x2xf32>
    tpu.vector_store %arg6[%c0_33, %c0_34], %43 {strides = array<i32>} : memref<2x2xf32, #tpu.memory_space<vmem>>, vector<2x2xf32>,
    return
  }
}

</mosaic_0001>

<llo_original>
// kernel: image_cam_wrapper_forward.1
$region0: #{image_cam_wrapper_forward.1}
  #allocation0 [shape = 'u32[]', space=smem, size = 0x4, offset = 0x4, fixed_abs, tag = 'smem constant byte address 0x4 - core index']
  #allocation1 [shape = 'u32[72,128]{1,0:T(1,128)}', space=vmem, size = 0x9000, scoped, tag = 'internal scratch']
  %s0 = inlined_call_operand.vmem [shape: bf16[512,128], index: 0, kind: input, shape index: {}]
  %s1 = inlined_call_operand.vmem [shape: bf16[128,128], index: 1, kind: input, shape index: {}]
  %s2 = inlined_call_operand.vmem [shape: f32[1,128], index: 2, kind: input, shape index: {}]
  %s3 = inlined_call_operand.vmem [shape: f32[2,512], index: 3, kind: input, shape index: {}]
  %s4 = inlined_call_operand.vmem [shape: f32[128,2], index: 4, kind: input, shape index: {}]
  %s5 = inlined_call_operand.vmem [shape: f32[1,2], index: 5, kind: input, shape index: {}]
  %s6 = inlined_call_operand.hbm [shape: f32[2,2], index: 6, kind: output, shape index: {}]
  %s7 = sld [smem:[#allocation0]]
  $region34: #{image_cam_wrapper_forward.1} parent=0
    _
  %s9 = ssub.s32 1, %s7
  %s10 = scalar_select 0, %s9, %s7
  $region1: #{image_cam_wrapper_forward.1} parent=0
    #allocation2 [shape = 'u8[1024]{0}', space=vmem, size = 0x400, scoped, tag = 'output window, operand 0, single buffered']
    #allocation3 [shape = 's32[1]{0}', space=sflag, size = 0x4, scoped, tag = 'scoped memory for image_cam_wrapper_forward.1']
    %11 = vsyncpa [#allocation3], 0
    // Predicated region
    $region2: #{image_cam_wrapper_forward.1} parent=1 // pred_check
      _
    $region3: #{image_cam_wrapper_forward.1} parent=1 // pred_check_branch
      %13 = sbr.rel (0) target = $region5
    $region4: #{image_cam_wrapper_forward.1} parent=1 // pred_region
      _
    $region5: #{image_cam_wrapper_forward.1} parent=1 // pred_fallthru
      _
    // Predicated region
    $region6: #{image_cam_wrapper_forward.1} parent=1 // pred_check
      _
    $region7: #{image_cam_wrapper_forward.1} parent=1 // pred_check_branch
      %15 = sbr.rel (0) target = $region9
    $region8: #{image_cam_wrapper_forward.1} parent=1 // pred_region
      _
    $region9: #{image_cam_wrapper_forward.1} parent=1 // pred_fallthru
      _
    // Predicated region
    $region10: #{image_cam_wrapper_forward.1} parent=1 // pred_check
      _
    $region11: #{image_cam_wrapper_forward.1} parent=1 // pred_check_branch
      %17 = sbr.rel (0) target = $region13
    $region12: #{image_cam_wrapper_forward.1} parent=1 // pred_region
      _
    $region13: #{image_cam_wrapper_forward.1} parent=1 // pred_fallthru
      _
    // Predicated region
    $region14: #{image_cam_wrapper_forward.1} parent=1 // pred_check
      _
    $region15: #{image_cam_wrapper_forward.1} parent=1 // pred_check_branch
      %19 = sbr.rel (0) target = $region17
    $region16: #{image_cam_wrapper_forward.1} parent=1 // pred_region
      _
    $region17: #{image_cam_wrapper_forward.1} parent=1 // pred_fallthru
      _
    // Predicated region
    $region18: #{image_cam_wrapper_forward.1} parent=1 // pred_check
      _
    $region19: #{image_cam_wrapper_forward.1} parent=1 // pred_check_branch
      %21 = sbr.rel (0) target = $region21
    $region20: #{image_cam_wrapper_forward.1} parent=1 // pred_region
      _
    $region21: #{image_cam_wrapper_forward.1} parent=1 // pred_fallthru
      _
    // Predicated region
    $region22: #{image_cam_wrapper_forward.1} parent=1 // pred_check
      _
    $region23: #{image_cam_wrapper_forward.1} parent=1 // pred_check_branch
      %23 = sbr.rel (0) target = $region25
    $region24: #{image_cam_wrapper_forward.1} parent=1 // pred_region
      _
    $region25: #{image_cam_wrapper_forward.1} parent=1 // pred_fallthru
      _
    %v24 = vld [vmem:[%s1] sm:$0xf]
    %v25 = vld [vmem:[%s1 + $0x4] sm:$0xf]
    %v26 = vld [vmem:[%s1 + $0x8] sm:$0xf]
    %v27 = vld [vmem:[%s1 + $0xc] sm:$0xf]
    %v28 = vld [vmem:[%s1 + $0x10] sm:$0xf]
    %v29 = vld [vmem:[%s1 + $0x14] sm:$0xf]
    %v30 = vld [vmem:[%s1 + $0x18] sm:$0xf]
    %v31 = vld [vmem:[%s1 + $0x1c] sm:$0xf]
    %v32 = vld [vmem:[%s1 + $0x20] sm:$0xf]
    %v33 = vld [vmem:[%s1 + $0x24] sm:$0xf]
    %v34 = vld [vmem:[%s1 + $0x28] sm:$0xf]
    %v35 = vld [vmem:[%s1 + $0x2c] sm:$0xf]
    %v36 = vld [vmem:[%s1 + $0x30] sm:$0xf]
    %v37 = vld [vmem:[%s1 + $0x34] sm:$0xf]
    %v38 = vld [vmem:[%s1 + $0x38] sm:$0xf]
    %v39 = vld [vmem:[%s1 + $0x3c] sm:$0xf]
    %v40 = vld [vmem:[%s2] sm:$0x1]
    %v41 = vld [vmem:[%s0] sm:$0xf]
    %v42 = vld [vmem:[%s0 + $0x4] sm:$0xf]
    %v43 = vld [vmem:[%s0 + $0x8] sm:$0xf]
    %v44 = vld [vmem:[%s0 + $0xc] sm:$0xf]
    %v45 = vld [vmem:[%s0 + $0x10] sm:$0xf]
    %v46 = vld [vmem:[%s0 + $0x14] sm:$0xf]
    %v47 = vld [vmem:[%s0 + $0x18] sm:$0xf]
    %v48 = vld [vmem:[%s0 + $0x1c] sm:$0xf]
    %v49 = vld [vmem:[%s0 + $0x20] sm:$0xf]
    %v50 = vld [vmem:[%s0 + $0x24] sm:$0xf]
    %v51 = vld [vmem:[%s0 + $0x28] sm:$0xf]
    %v52 = vld [vmem:[%s0 + $0x2c] sm:$0xf]
    %v53 = vld [vmem:[%s0 + $0x30] sm:$0xf]
    %v54 = vld [vmem:[%s0 + $0x34] sm:$0xf]
    %v55 = vld [vmem:[%s0 + $0x38] sm:$0xf]
    %v56 = vld [vmem:[%s0 + $0x3c] sm:$0xf]
    %v58 = vperm.slane %v40, 0
    %v76 = vunpack.c.l.b16 %v41
    %v77 = vunpack.c.l.b16 %v42
    %v78 = vunpack.c.l.b16 %v43
    %v79 = vunpack.c.l.b16 %v44
    %v80 = vunpack.c.l.b16 %v45
    %v81 = vunpack.c.l.b16 %v46
    %v82 = vunpack.c.l.b16 %v47
    %v83 = vunpack.c.l.b16 %v48
    %v84 = vunpack.c.l.b16 %v49
    %v85 = vunpack.c.l.b16 %v50
    %v86 = vunpack.c.l.b16 %v51
    %v87 = vunpack.c.l.b16 %v52
    %v88 = vunpack.c.l.b16 %v53
    %v89 = vunpack.c.l.b16 %v54
    %v90 = vunpack.c.l.b16 %v55
    %v91 = vunpack.c.l.b16 %v56
    %v92 = vpack.c.b16 %v77, %v76
    %v93 = vpack.c.b16 %v79, %v78
    %v94 = vpack.c.b16 %v81, %v80
    %v95 = vpack.c.b16 %v83, %v82
    %v96 = vpack.c.b16 %v85, %v84
    %v97 = vpack.c.b16 %v87, %v86
    %v98 = vpack.c.b16 %v89, %v88
    %v99 = vpack.c.b16 %v91, %v90
    %v124 = vunpack.c.l.b16 %v24
    %v125 = vunpack.c.l.b16 %v25
    %v126 = vunpack.c.l.b16 %v26
    %v127 = vunpack.c.l.b16 %v27
    %v128 = vunpack.c.l.b16 %v28
    %v129 = vunpack.c.l.b16 %v29
    %v130 = vunpack.c.l.b16 %v30
    %v131 = vunpack.c.l.b16 %v31
    %v132 = vunpack.c.l.b16 %v32
    %v133 = vunpack.c.l.b16 %v33
    %v134 = vunpack.c.l.b16 %v34
    %v135 = vunpack.c.l.b16 %v35
    %v136 = vunpack.c.l.b16 %v36
    %v137 = vunpack.c.l.b16 %v37
    %v138 = vunpack.c.l.b16 %v38
    %v139 = vunpack.c.l.b16 %v39
    %v140 = vpack.c.b16 %v125, %v124
    %v141 = vpack.c.b16 %v127, %v126
    %v142 = vpack.c.b16 %v129, %v128
    %v143 = vpack.c.b16 %v131, %v130
    %v144 = vpack.c.b16 %v133, %v132
    %v145 = vpack.c.b16 %v135, %v134
    %v146 = vpack.c.b16 %v137, %v136
    %v147 = vpack.c.b16 %v139, %v138
    %156 = vmatpush.bf16.msra.mxu0 %v147
    %157 = vmatpush.bf16.msra.mxu0 %v146
    %158 = vmatpush.bf16.msra.mxu0 %v145
    %159 = vmatpush.bf16.msra.mxu0 %v144
    %160 = vmatpush.bf16.msra.mxu0 %v143
    %161 = vmatpush.bf16.msra.mxu0 %v142
    %162 = vmatpush.bf16.msra.mxu0 %v141
    %163 = vmatpush.bf16.msra.mxu0 %v140
    %164 = vmatmul.bf16.gmra.mxu0 %v92
    %v165 = vpop.f32.mrf.mxu0
    %v166 = vadd.f32 %v58, %v165
    %v167 = vpop.f32.mrf.mxu0
    %v168 = vadd.f32 %v58, %v167
    %169 = vmatmul.bf16.gmra.mxu0 %v93
    %v170 = vpop.f32.mrf.mxu0
    %v171 = vadd.f32 %v58, %v170
    %v172 = vpop.f32.mrf.mxu0
    %v173 = vadd.f32 %v58, %v172
    %174 = vmatmul.bf16.gmra.mxu0 %v94
    %v175 = vpop.f32.mrf.mxu0
    %v176 = vadd.f32 %v58, %v175
    %v177 = vpop.f32.mrf.mxu0
    %v178 = vadd.f32 %v58, %v177
    %179 = vmatmul.bf16.gmra.mxu0 %v95
    %v180 = vpop.f32.mrf.mxu0
    %v181 = vadd.f32 %v58, %v180
    %v182 = vpop.f32.mrf.mxu0
    %v183 = vadd.f32 %v58, %v182
    %184 = vmatmul.bf16.gmra.mxu0 %v96
    %v185 = vpop.f32.mrf.mxu0
    %v186 = vadd.f32 %v58, %v185
    %v187 = vpop.f32.mrf.mxu0
    %v188 = vadd.f32 %v58, %v187
    %189 = vmatmul.bf16.gmra.mxu0 %v97
    %v190 = vpop.f32.mrf.mxu0
    %v191 = vadd.f32 %v58, %v190
    %v192 = vpop.f32.mrf.mxu0
    %v193 = vadd.f32 %v58, %v192
    %194 = vmatmul.bf16.gmra.mxu0 %v98
    %v195 = vpop.f32.mrf.mxu0
    %v196 = vadd.f32 %v58, %v195
    %v197 = vpop.f32.mrf.mxu0
    %v198 = vadd.f32 %v58, %v197
    %199 = vmatmul.bf16.gmra.mxu0 %v99
    %v200 = vpop.f32.mrf.mxu0
    %v201 = vadd.f32 %v58, %v200
    %v202 = vpop.f32.mrf.mxu0
    %v203 = vadd.f32 %v58, %v202
    %204 = vdwg.mxu0
    %v205 = vmax.f32 %v166, 0.0
    %v206 = vmax.f32 %v168, 0.0
    %v207 = vmax.f32 %v171, 0.0
    %v208 = vmax.f32 %v173, 0.0
    %v209 = vmax.f32 %v176, 0.0
    %v210 = vmax.f32 %v178, 0.0
    %v211 = vmax.f32 %v181, 0.0
    %v212 = vmax.f32 %v183, 0.0
    %v213 = vmax.f32 %v186, 0.0
    %v214 = vmax.f32 %v188, 0.0
    %v215 = vmax.f32 %v191, 0.0
    %v216 = vmax.f32 %v193, 0.0
    %v217 = vmax.f32 %v196, 0.0
    %v218 = vmax.f32 %v198, 0.0
    %v219 = vmax.f32 %v201, 0.0
    %v220 = vmax.f32 %v203, 0.0
    %v221 = vld [vmem:[%s3] sm:$0x3]
    %v222 = vld [vmem:[%s0 + $0x40] sm:$0xf]
    %v223 = vld [vmem:[%s0 + $0x44] sm:$0xf]
    %v224 = vld [vmem:[%s0 + $0x48] sm:$0xf]
    %v225 = vld [vmem:[%s0 + $0x4c] sm:$0xf]
    %v226 = vld [vmem:[%s0 + $0x50] sm:$0xf]
    %v227 = vld [vmem:[%s0 + $0x54] sm:$0xf]
    %v228 = vld [vmem:[%s0 + $0x58] sm:$0xf]
    %v229 = vld [vmem:[%s0 + $0x5c] sm:$0xf]
    %v230 = vld [vmem:[%s0 + $0x60] sm:$0xf]
    %v231 = vld [vmem:[%s0 + $0x64] sm:$0xf]
    %v232 = vld [vmem:[%s0 + $0x68] sm:$0xf]
    %v233 = vld [vmem:[%s0 + $0x6c] sm:$0xf]
    %v234 = vld [vmem:[%s0 + $0x70] sm:$0xf]
    %v235 = vld [vmem:[%s0 + $0x74] sm:$0xf]
    %v236 = vld [vmem:[%s0 + $0x78] sm:$0xf]
    %v237 = vld [vmem:[%s0 + $0x7c] sm:$0xf]
    %v254 = vunpack.c.l.b16 %v222
    %v255 = vunpack.c.l.b16 %v223
    %v256 = vunpack.c.l.b16 %v224
    %v257 = vunpack.c.l.b16 %v225
    %v258 = vunpack.c.l.b16 %v226
    %v259 = vunpack.c.l.b16 %v227
    %v260 = vunpack.c.l.b16 %v228
    %v261 = vunpack.c.l.b16 %v229
    %v262 = vunpack.c.l.b16 %v230
    %v263 = vunpack.c.l.b16 %v231
    %v264 = vunpack.c.l.b16 %v232
    %v265 = vunpack.c.l.b16 %v233
    %v266 = vunpack.c.l.b16 %v234
    %v267 = vunpack.c.l.b16 %v235
    %v268 = vunpack.c.l.b16 %v236
    %v269 = vunpack.c.l.b16 %v237
    %v270 = vpack.c.b16 %v255, %v254
    %v271 = vpack.c.b16 %v257, %v256
    %v272 = vpack.c.b16 %v259, %v258
    %v273 = vpack.c.b16 %v261, %v260
    %v274 = vpack.c.b16 %v263, %v262
    %v275 = vpack.c.b16 %v265, %v264
    %v276 = vpack.c.b16 %v267, %v266
    %v277 = vpack.c.b16 %v269, %v268
    %286 = vmatpush.bf16.msra.mxu0 %v147
    %287 = vmatpush.bf16.msra.mxu0 %v146
    %288 = vmatpush.bf16.msra.mxu0 %v145
    %289 = vmatpush.bf16.msra.mxu0 %v144
    %290 = vmatpush.bf16.msra.mxu0 %v143
    %291 = vmatpush.bf16.msra.mxu0 %v142
    %292 = vmatpush.bf16.msra.mxu0 %v141
    %293 = vmatpush.bf16.msra.mxu0 %v140
    %294 = vmatmul.bf16.gmra.mxu0 %v270
    %v295 = vpop.f32.mrf.mxu0
    %v296 = vadd.f32 %v58, %v295
    %v297 = vpop.f32.mrf.mxu0
    %v298 = vadd.f32 %v58, %v297
    %299 = vmatmul.bf16.gmra.mxu0 %v271
    %v300 = vpop.f32.mrf.mxu0
    %v301 = vadd.f32 %v58, %v300
    %v302 = vpop.f32.mrf.mxu0
    %v303 = vadd.f32 %v58, %v302
    %304 = vmatmul.bf16.gmra.mxu0 %v272
    %v305 = vpop.f32.mrf.mxu0
    %v306 = vadd.f32 %v58, %v305
    %v307 = vpop.f32.mrf.mxu0
    %v308 = vadd.f32 %v58, %v307
    %309 = vmatmul.bf16.gmra.mxu0 %v273
    %v310 = vpop.f32.mrf.mxu0
    %v311 = vadd.f32 %v58, %v310
    %v312 = vpop.f32.mrf.mxu0
    %v313 = vadd.f32 %v58, %v312
    %314 = vmatmul.bf16.gmra.mxu0 %v274
    %v315 = vpop.f32.mrf.mxu0
    %v316 = vadd.f32 %v58, %v315
    %v317 = vpop.f32.mrf.mxu0
    %v318 = vadd.f32 %v58, %v317
    %319 = vmatmul.bf16.gmra.mxu0 %v275
    %v320 = vpop.f32.mrf.mxu0
    %v321 = vadd.f32 %v58, %v320
    %v322 = vpop.f32.mrf.mxu0
    %v323 = vadd.f32 %v58, %v322
    %324 = vmatmul.bf16.gmra.mxu0 %v276
    %v325 = vpop.f32.mrf.mxu0
    %v326 = vadd.f32 %v58, %v325
    %v327 = vpop.f32.mrf.mxu0
    %v328 = vadd.f32 %v58, %v327
    %329 = vmatmul.bf16.gmra.mxu0 %v277
    %v330 = vpop.f32.mrf.mxu0
    %v331 = vadd.f32 %v58, %v330
    %v332 = vpop.f32.mrf.mxu0
    %v333 = vadd.f32 %v58, %v332
    %334 = vdwg.mxu0
    %v335 = vmax.f32 %v296, 0.0
    %v336 = vmax.f32 %v298, 0.0
    %v337 = vmax.f32 %v301, 0.0
    %v338 = vmax.f32 %v303, 0.0
    %v339 = vmax.f32 %v306, 0.0
    %v340 = vmax.f32 %v308, 0.0
    %v341 = vmax.f32 %v311, 0.0
    %v342 = vmax.f32 %v313, 0.0
    %v343 = vmax.f32 %v316, 0.0
    %v344 = vmax.f32 %v318, 0.0
    %v345 = vmax.f32 %v321, 0.0
    %v346 = vmax.f32 %v323, 0.0
    %v347 = vmax.f32 %v326, 0.0
    %v348 = vmax.f32 %v328, 0.0
    %v349 = vmax.f32 %v331, 0.0
    %v350 = vmax.f32 %v333, 0.0
    %v351 = vld [vmem:[%s3 + $0x2] sm:$0x3]
    %352 = vmatpush.msra.mxu0 %v350
    %353 = vmatpush.msra.mxu0 %v349
    %354 = vmatpush.msra.mxu0 %v348
    %355 = vmatpush.msra.mxu0 %v347
    %356 = vmatpush.msra.mxu0 %v346
    %357 = vmatpush.msra.mxu0 %v345
    %358 = vmatpush.msra.mxu0 %v344
    %359 = vmatpush.msra.mxu0 %v343
    %360 = vmatpush.msra.mxu0 %v342
    %361 = vmatpush.msra.mxu0 %v341
    %362 = vmatpush.msra.mxu0 %v340
    %363 = vmatpush.msra.mxu0 %v339
    %364 = vmatpush.msra.mxu0 %v338
    %365 = vmatpush.msra.mxu0 %v337
    %366 = vmatpush.msra.mxu0 %v336
    %367 = vmatpush.msra.mxu0 %v335
    %368 = vmatmul.f32.gmra.mxu0 %v351
    %v369 = vpop.f32.mrf.mxu0
    %v370 = vadd.f32 0.0, %v369
    %371 = vdwg.mxu0
    %372 = vmatpush.msra.mxu0 %v220
    %373 = vmatpush.msra.mxu0 %v219
    %374 = vmatpush.msra.mxu0 %v218
    %375 = vmatpush.msra.mxu0 %v217
    %376 = vmatpush.msra.mxu0 %v216
    %377 = vmatpush.msra.mxu0 %v215
    %378 = vmatpush.msra.mxu0 %v214
    %379 = vmatpush.msra.mxu0 %v213
    %380 = vmatpush.msra.mxu0 %v212
    %381 = vmatpush.msra.mxu0 %v211
    %382 = vmatpush.msra.mxu0 %v210
    %383 = vmatpush.msra.mxu0 %v209
    %384 = vmatpush.msra.mxu0 %v208
    %385 = vmatpush.msra.mxu0 %v207
    %386 = vmatpush.msra.mxu0 %v206
    %387 = vmatpush.msra.mxu0 %v205
    %388 = vmatmul.f32.gmra.mxu0 %v221
    %v389 = vpop.f32.mrf.mxu0
    %v390 = vadd.f32 %v370, %v389
    %391 = vdwg.mxu0
    %v392 = vld [vmem:[%s0 + $0x80] sm:$0xf]
    %v393 = vld [vmem:[%s0 + $0x84] sm:$0xf]
    %v394 = vld [vmem:[%s0 + $0x88] sm:$0xf]
    %v395 = vld [vmem:[%s0 + $0x8c] sm:$0xf]
    %v396 = vld [vmem:[%s0 + $0x90] sm:$0xf]
    %v397 = vld [vmem:[%s0 + $0x94] sm:$0xf]
    %v398 = vld [vmem:[%s0 + $0x98] sm:$0xf]
    %v399 = vld [vmem:[%s0 + $0x9c] sm:$0xf]
    %v400 = vld [vmem:[%s0 + $0xa0] sm:$0xf]
    %v401 = vld [vmem:[%s0 + $0xa4] sm:$0xf]
    %v402 = vld [vmem:[%s0 + $0xa8] sm:$0xf]
    %v403 = vld [vmem:[%s0 + $0xac] sm:$0xf]
    %v404 = vld [vmem:[%s0 + $0xb0] sm:$0xf]
    %v405 = vld [vmem:[%s0 + $0xb4] sm:$0xf]
    %v406 = vld [vmem:[%s0 + $0xb8] sm:$0xf]
    %v407 = vld [vmem:[%s0 + $0xbc] sm:$0xf]
    %v424 = vunpack.c.l.b16 %v392
    %v425 = vunpack.c.l.b16 %v393
    %v426 = vunpack.c.l.b16 %v394
    %v427 = vunpack.c.l.b16 %v395
    %v428 = vunpack.c.l.b16 %v396
    %v429 = vunpack.c.l.b16 %v397
    %v430 = vunpack.c.l.b16 %v398
    %v431 = vunpack.c.l.b16 %v399
    %v432 = vunpack.c.l.b16 %v400
    %v433 = vunpack.c.l.b16 %v401
    %v434 = vunpack.c.l.b16 %v402
    %v435 = vunpack.c.l.b16 %v403
    %v436 = vunpack.c.l.b16 %v404
    %v437 = vunpack.c.l.b16 %v405
    %v438 = vunpack.c.l.b16 %v406
    %v439 = vunpack.c.l.b16 %v407
    %v440 = vpack.c.b16 %v425, %v424
    %v441 = vpack.c.b16 %v427, %v426
    %v442 = vpack.c.b16 %v429, %v428
    %v443 = vpack.c.b16 %v431, %v430
    %v444 = vpack.c.b16 %v433, %v432
    %v445 = vpack.c.b16 %v435, %v434
    %v446 = vpack.c.b16 %v437, %v436
    %v447 = vpack.c.b16 %v439, %v438
    %456 = vmatpush.bf16.msra.mxu0 %v147
    %457 = vmatpush.bf16.msra.mxu0 %v146
    %458 = vmatpush.bf16.msra.mxu0 %v145
    %459 = vmatpush.bf16.msra.mxu0 %v144
    %460 = vmatpush.bf16.msra.mxu0 %v143
    %461 = vmatpush.bf16.msra.mxu0 %v142
    %462 = vmatpush.bf16.msra.mxu0 %v141
    %463 = vmatpush.bf16.msra.mxu0 %v140
    %464 = vmatmul.bf16.gmra.mxu0 %v440
    %v465 = vpop.f32.mrf.mxu0
    %v466 = vadd.f32 %v58, %v465
    %v467 = vpop.f32.mrf.mxu0
    %v468 = vadd.f32 %v58, %v467
    %469 = vmatmul.bf16.gmra.mxu0 %v441
    %v470 = vpop.f32.mrf.mxu0
    %v471 = vadd.f32 %v58, %v470
    %v472 = vpop.f32.mrf.mxu0
    %v473 = vadd.f32 %v58, %v472
    %474 = vmatmul.bf16.gmra.mxu0 %v442
    %v475 = vpop.f32.mrf.mxu0
    %v476 = vadd.f32 %v58, %v475
    %v477 = vpop.f32.mrf.mxu0
    %v478 = vadd.f32 %v58, %v477
    %479 = vmatmul.bf16.gmra.mxu0 %v443
    %v480 = vpop.f32.mrf.mxu0
    %v481 = vadd.f32 %v58, %v480
    %v482 = vpop.f32.mrf.mxu0
    %v483 = vadd.f32 %v58, %v482
    %484 = vmatmul.bf16.gmra.mxu0 %v444
    %v485 = vpop.f32.mrf.mxu0
    %v486 = vadd.f32 %v58, %v485
    %v487 = vpop.f32.mrf.mxu0
    %v488 = vadd.f32 %v58, %v487
    %489 = vmatmul.bf16.gmra.mxu0 %v445
    %v490 = vpop.f32.mrf.mxu0
    %v491 = vadd.f32 %v58, %v490
    %v492 = vpop.f32.mrf.mxu0
    %v493 = vadd.f32 %v58, %v492
    %494 = vmatmul.bf16.gmra.mxu0 %v446
    %v495 = vpop.f32.mrf.mxu0
    %v496 = vadd.f32 %v58, %v495
    %v497 = vpop.f32.mrf.mxu0
    %v498 = vadd.f32 %v58, %v497
    %499 = vmatmul.bf16.gmra.mxu0 %v447
    %v500 = vpop.f32.mrf.mxu0
    %v501 = vadd.f32 %v58, %v500
    %v502 = vpop.f32.mrf.mxu0
    %v503 = vadd.f32 %v58, %v502
    %504 = vdwg.mxu0
    %v505 = vmax.f32 %v466, 0.0
    %v506 = vmax.f32 %v468, 0.0
    %v507 = vmax.f32 %v471, 0.0
    %v508 = vmax.f32 %v473, 0.0
    %v509 = vmax.f32 %v476, 0.0
    %v510 = vmax.f32 %v478, 0.0
    %v511 = vmax.f32 %v481, 0.0
    %v512 = vmax.f32 %v483, 0.0
    %v513 = vmax.f32 %v486, 0.0
    %v514 = vmax.f32 %v488, 0.0
    %v515 = vmax.f32 %v491, 0.0
    %v516 = vmax.f32 %v493, 0.0
    %v517 = vmax.f32 %v496, 0.0
    %v518 = vmax.f32 %v498, 0.0
    %v519 = vmax.f32 %v501, 0.0
    %v520 = vmax.f32 %v503, 0.0
    %v521 = vld [vmem:[%s3 + $0x4] sm:$0x3]
    %522 = vmatpush.msra.mxu0 %v520
    %523 = vmatpush.msra.mxu0 %v519
    %524 = vmatpush.msra.mxu0 %v518
    %525 = vmatpush.msra.mxu0 %v517
    %526 = vmatpush.msra.mxu0 %v516
    %527 = vmatpush.msra.mxu0 %v515
    %528 = vmatpush.msra.mxu0 %v514
    %529 = vmatpush.msra.mxu0 %v513
    %530 = vmatpush.msra.mxu0 %v512
    %531 = vmatpush.msra.mxu0 %v511
    %532 = vmatpush.msra.mxu0 %v510
    %533 = vmatpush.msra.mxu0 %v509
    %534 = vmatpush.msra.mxu0 %v508
    %535 = vmatpush.msra.mxu0 %v507
    %536 = vmatpush.msra.mxu0 %v506
    %537 = vmatpush.msra.mxu0 %v505
    %538 = vmatmul.f32.gmra.mxu0 %v521
    %v539 = vpop.f32.mrf.mxu0
    %v540 = vadd.f32 0.0, %v539
    %541 = vdwg.mxu0
    %v542 = vadd.f32 %v390, %v540
    %v543 = vld [vmem:[%s0 + $0xc0] sm:$0xf]
    %v544 = vld [vmem:[%s0 + $0xc4] sm:$0xf]
    %v545 = vld [vmem:[%s0 + $0xc8] sm:$0xf]
    %v546 = vld [vmem:[%s0 + $0xcc] sm:$0xf]
    %v547 = vld [vmem:[%s0 + $0xd0] sm:$0xf]
    %v548 = vld [vmem:[%s0 + $0xd4] sm:$0xf]
    %v549 = vld [vmem:[%s0 + $0xd8] sm:$0xf]
    %v550 = vld [vmem:[%s0 + $0xdc] sm:$0xf]
    %v551 = vld [vmem:[%s0 + $0xe0] sm:$0xf]
    %v552 = vld [vmem:[%s0 + $0xe4] sm:$0xf]
    %v553 = vld [vmem:[%s0 + $0xe8] sm:$0xf]
    %v554 = vld [vmem:[%s0 + $0xec] sm:$0xf]
    %v555 = vld [vmem:[%s0 + $0xf0] sm:$0xf]
    %v556 = vld [vmem:[%s0 + $0xf4] sm:$0xf]
    %v557 = vld [vmem:[%s0 + $0xf8] sm:$0xf]
    %v558 = vld [vmem:[%s0 + $0xfc] sm:$0xf]
    %v575 = vunpack.c.l.b16 %v543
    %v576 = vunpack.c.l.b16 %v544
    %v577 = vunpack.c.l.b16 %v545
    %v578 = vunpack.c.l.b16 %v546
    %v579 = vunpack.c.l.b16 %v547
    %v580 = vunpack.c.l.b16 %v548
    %v581 = vunpack.c.l.b16 %v549
    %v582 = vunpack.c.l.b16 %v550
    %v583 = vunpack.c.l.b16 %v551
    %v584 = vunpack.c.l.b16 %v552
    %v585 = vunpack.c.l.b16 %v553
    %v586 = vunpack.c.l.b16 %v554
    %v587 = vunpack.c.l.b16 %v555
    %v588 = vunpack.c.l.b16 %v556
    %v589 = vunpack.c.l.b16 %v557
    %v590 = vunpack.c.l.b16 %v558
    %v591 = vpack.c.b16 %v576, %v575
    %v592 = vpack.c.b16 %v578, %v577
    %v593 = vpack.c.b16 %v580, %v579
    %v594 = vpack.c.b16 %v582, %v581
    %v595 = vpack.c.b16 %v584, %v583
    %v596 = vpack.c.b16 %v586, %v585
    %v597 = vpack.c.b16 %v588, %v587
    %v598 = vpack.c.b16 %v590, %v589
    %607 = vmatpush.bf16.msra.mxu0 %v147
    %608 = vmatpush.bf16.msra.mxu0 %v146
    %609 = vmatpush.bf16.msra.mxu0 %v145
    %610 = vmatpush.bf16.msra.mxu0 %v144
    %611 = vmatpush.bf16.msra.mxu0 %v143
    %612 = vmatpush.bf16.msra.mxu0 %v142
    %613 = vmatpush.bf16.msra.mxu0 %v141
    %614 = vmatpush.bf16.msra.mxu0 %v140
    %615 = vmatmul.bf16.gmra.mxu0 %v591
    %v616 = vpop.f32.mrf.mxu0
    %v617 = vadd.f32 %v58, %v616
    %v618 = vpop.f32.mrf.mxu0
    %v619 = vadd.f32 %v58, %v618
    %620 = vmatmul.bf16.gmra.mxu0 %v592
    %v621 = vpop.f32.mrf.mxu0
    %v622 = vadd.f32 %v58, %v621
    %v623 = vpop.f32.mrf.mxu0
    %v624 = vadd.f32 %v58, %v623
    %625 = vmatmul.bf16.gmra.mxu0 %v593
    %v626 = vpop.f32.mrf.mxu0
    %v627 = vadd.f32 %v58, %v626
    %v628 = vpop.f32.mrf.mxu0
    %v629 = vadd.f32 %v58, %v628
    %630 = vmatmul.bf16.gmra.mxu0 %v594
    %v631 = vpop.f32.mrf.mxu0
    %v632 = vadd.f32 %v58, %v631
    %v633 = vpop.f32.mrf.mxu0
    %v634 = vadd.f32 %v58, %v633
    %635 = vmatmul.bf16.gmra.mxu0 %v595
    %v636 = vpop.f32.mrf.mxu0
    %v637 = vadd.f32 %v58, %v636
    %v638 = vpop.f32.mrf.mxu0
    %v639 = vadd.f32 %v58, %v638
    %640 = vmatmul.bf16.gmra.mxu0 %v596
    %v641 = vpop.f32.mrf.mxu0
    %v642 = vadd.f32 %v58, %v641
    %v643 = vpop.f32.mrf.mxu0
    %v644 = vadd.f32 %v58, %v643
    %645 = vmatmul.bf16.gmra.mxu0 %v597
    %v646 = vpop.f32.mrf.mxu0
    %v647 = vadd.f32 %v58, %v646
    %v648 = vpop.f32.mrf.mxu0
    %v649 = vadd.f32 %v58, %v648
    %650 = vmatmul.bf16.gmra.mxu0 %v598
    %v651 = vpop.f32.mrf.mxu0
    %v652 = vadd.f32 %v58, %v651
    %v653 = vpop.f32.mrf.mxu0
    %v654 = vadd.f32 %v58, %v653
    %655 = vdwg.mxu0
    %v656 = vmax.f32 %v617, 0.0
    %v657 = vmax.f32 %v619, 0.0
    %v658 = vmax.f32 %v622, 0.0
    %v659 = vmax.f32 %v624, 0.0
    %v660 = vmax.f32 %v627, 0.0
    %v661 = vmax.f32 %v629, 0.0
    %v662 = vmax.f32 %v632, 0.0
    %v663 = vmax.f32 %v634, 0.0
    %v664 = vmax.f32 %v637, 0.0
    %v665 = vmax.f32 %v639, 0.0
    %v666 = vmax.f32 %v642, 0.0
    %v667 = vmax.f32 %v644, 0.0
    %v668 = vmax.f32 %v647, 0.0
    %v669 = vmax.f32 %v649, 0.0
    %v670 = vmax.f32 %v652, 0.0
    %v671 = vmax.f32 %v654, 0.0
    %v672 = vld [vmem:[%s3 + $0x6] sm:$0x3]
    %673 = vmatpush.msra.mxu0 %v671
    %674 = vmatpush.msra.mxu0 %v670
    %675 = vmatpush.msra.mxu0 %v669
    %676 = vmatpush.msra.mxu0 %v668
    %677 = vmatpush.msra.mxu0 %v667
    %678 = vmatpush.msra.mxu0 %v666
    %679 = vmatpush.msra.mxu0 %v665
    %680 = vmatpush.msra.mxu0 %v664
    %681 = vmatpush.msra.mxu0 %v663
    %682 = vmatpush.msra.mxu0 %v662
    %683 = vmatpush.msra.mxu0 %v661
    %684 = vmatpush.msra.mxu0 %v660
    %685 = vmatpush.msra.mxu0 %v659
    %686 = vmatpush.msra.mxu0 %v658
    %687 = vmatpush.msra.mxu0 %v657
    %688 = vmatpush.msra.mxu0 %v656
    %689 = vmatmul.f32.gmra.mxu0 %v672
    %v690 = vpop.f32.mrf.mxu0
    %v691 = vadd.f32 0.0, %v690
    %692 = vdwg.mxu0
    %v693 = vadd.f32 %v542, %v691
    %v694 = vld [vmem:[%s4] sm:$0xff]
    %v695 = vld [vmem:[%s4 + $0x8] sm:$0xff]
    %v696 = vld [vmem:[%s4 + $0x10] sm:$0xff]
    %v697 = vld [vmem:[%s4 + $0x18] sm:$0xff]
    %v698 = vld [vmem:[%s4 + $0x20] sm:$0xff]
    %v699 = vld [vmem:[%s4 + $0x28] sm:$0xff]
    %v700 = vld [vmem:[%s4 + $0x30] sm:$0xff]
    %v701 = vld [vmem:[%s4 + $0x38] sm:$0xff]
    %v702 = vld [vmem:[%s4 + $0x40] sm:$0xff]
    %v703 = vld [vmem:[%s4 + $0x48] sm:$0xff]
    %v704 = vld [vmem:[%s4 + $0x50] sm:$0xff]
    %v705 = vld [vmem:[%s4 + $0x58] sm:$0xff]
    %v706 = vld [vmem:[%s4 + $0x60] sm:$0xff]
    %v707 = vld [vmem:[%s4 + $0x68] sm:$0xff]
    %v708 = vld [vmem:[%s4 + $0x70] sm:$0xff]
    %v709 = vld [vmem:[%s4 + $0x78] sm:$0xff]
    %v710 = vld [vmem:[%s5] sm:$0x1]
    %v712 = vperm.slane %v710, 0
    %714 = vmatpush.msra.mxu0 %v709
    %715 = vmatpush.msra.mxu0 %v708
    %716 = vmatpush.msra.mxu0 %v707
    %717 = vmatpush.msra.mxu0 %v706
    %718 = vmatpush.msra.mxu0 %v705
    %719 = vmatpush.msra.mxu0 %v704
    %720 = vmatpush.msra.mxu0 %v703
    %721 = vmatpush.msra.mxu0 %v702
    %722 = vmatpush.msra.mxu0 %v701
    %723 = vmatpush.msra.mxu0 %v700
    %724 = vmatpush.msra.mxu0 %v699
    %725 = vmatpush.msra.mxu0 %v698
    %726 = vmatpush.msra.mxu0 %v697
    %727 = vmatpush.msra.mxu0 %v696
    %728 = vmatpush.msra.mxu0 %v695
    %729 = vmatpush.msra.mxu0 %v694
    %730 = vmatmul.f32.gmra.mxu0 %v693
    %v731 = vpop.f32.mrf.mxu0
    %v732 = vadd.f32 %v712, %v731
    %733 = vdwg.mxu0
    %vm734 = vcmask 9216
    %735 = vst.msk [vmem:[#allocation2] sm:$0x3] %vm734, %v732
    // Predicated region
    $region26: #{image_cam_wrapper_forward.1} parent=1 // pred_check
      _
    $region27: #{image_cam_wrapper_forward.1} parent=1 // pred_check_branch
      %737 = sbr.rel (0) target = $region29
    $region28: #{image_cam_wrapper_forward.1} parent=1 // pred_region
      %739 = vsyncadd [#allocation3], 0
      %s741 = sshll.u32 [#allocation2], 4
      %s742 = int_to_ptr.vmem [resolvable:$true] %s741
      %s743 = sshll.u32 %s6, 4
      %s744 = int_to_ptr.hbm [resolvable:$true] %s743
      %746 = dma.vmem_to_hbm [thread:$0]  %s742, 32, %s744, [#allocation3]
    $region29: #{image_cam_wrapper_forward.1} parent=1 // pred_fallthru
      _
    // Predicated region
    $region30: #{image_cam_wrapper_forward.1} parent=1 // pred_check
      _
    $region31: #{image_cam_wrapper_forward.1} parent=1 // pred_check_branch
      %748 = sbr.rel (0) target = $region33
    $region32: #{image_cam_wrapper_forward.1} parent=1 // pred_region
      %750 = dma.done [#allocation3], 32
    $region33: #{image_cam_wrapper_forward.1} parent=1 // pred_fallthru
      _
    %751 = vsyncpa [#allocation3], 1

</llo_original>
